<compile_context>
chip_gen: v6e
topology: v6e:2x2x1
jax: 0.10.0
libtpu: 0.0.40
codegen_flags: <defaults>
</compile_context>

<pallas_src>
import functools

import jax
import jax.numpy as jnp
from jax import lax
from jax.experimental import pallas as pl
from jax.experimental.pallas import tpu as pltpu


# --------------------------------------------------------------------------- #
# Kernel
# --------------------------------------------------------------------------- #
def _llama_mlp_kernel(x_ref, wgu_ref, wd_ref, o_ref, acc_ref, *, ti):
    # x_ref   : (tm, H)       current row tile of the flattened input
    # wgu_ref : (2*ti, H)     fused [gate_tile ; up_tile] weight rows (contiguous)
    # wd_ref  : (ti, H)       repacked down_proj tile, (K, N) orientation
    # o_ref   : (tm, H)       output tile (resident across the reduction axis)
    # acc_ref : (tm, H) f32   accumulator scratch

    @pl.when(pl.program_id(1) == 0)
    def _init():
        acc_ref[...] = jnp.zeros_like(acc_ref)

    x = x_ref[...]

    # One MXU matmul for gate AND up: contract the hidden dim (last dim of both
    # operands) -> no weight transpose materialized in-kernel.
    gu = lax.dot_general(
        x, wgu_ref[...],
        dimension_numbers=(((1,), (1,)), ((), ())),
        preferred_element_type=jnp.float32,
    )                                       # (tm, 2*ti), f32
    g = gu[:, :ti]
    u = gu[:, ti:]
    h = (g * jax.nn.sigmoid(g)) * u         # SiLU(g) * u, in f32

    # Partial down projection for this intermediate slice.  wd_ref is already
    # in (K=ti, N=H) orientation -> plain (tm,ti) x (ti,H) matmul.
    acc_ref[...] += lax.dot_general(
        h.astype(x.dtype), wd_ref[...],
        dimension_numbers=(((1,), (0,)), ((), ())),
        preferred_element_type=jnp.float32,
    )                                       # (tm, H)

    @pl.when(pl.program_id(1) == pl.num_programs(1) - 1)
    def _finalize():
        o_ref[...] = acc_ref[...].astype(o_ref.dtype)


# --------------------------------------------------------------------------- #
# Planning helpers
# --------------------------------------------------------------------------- #
def _pick_tile(dim, target, multiple):
    """Largest multiple-of-`multiple` divisor of `dim` that is <= target.
    Falls back to the full dim (always satisfies Mosaic's (8,128) rule)."""
    if dim <= target:
        return dim
    t = (target // multiple) * multiple
    while t >= multiple:
        if dim % t == 0:
            return t
        t -= multiple
    return dim


def _vmem_bytes(tm, ti, hidden, act_bytes, w_bytes):
    """Per-step VMEM footprint (double-buffered inputs, resident output)."""
    return (2 * tm * hidden * act_bytes          # x tile, double-buffered
            + 2 * (2 * ti) * hidden * w_bytes    # [gate;up] tile, double-buffered
            + 2 * ti * hidden * w_bytes          # down-proj tile, double-buffered
            + tm * hidden * act_bytes            # output tile (resident across i)
            + tm * hidden * 4                    # f32 accumulator scratch
            + tm * (2 * ti) * 4                  # f32 gu temporary
            + tm * ti * act_bytes)               # h cast fed to the down matmul


def _chip_plan():
    """Return (vmem_budget_bytes, vmem_cap_bytes, tm_target, num_tensorcores)."""
    kind = ""
    try:
        kind = (getattr(jax.devices()[0], "device_kind", "") or "").lower()
    except Exception:
        pass
    if "v7" in kind:
        # 64 MiB VMEM / TC, 2 TCs per chip: stay well under the physical cap.
        return 44 * 2**20, 56 * 2**20, 512, 2
    if "v6" in kind:
        # 128 MiB VMEM, 1 TC: big tm crosses the ~670 flop/B roofline knee.
        return 96 * 2**20, 120 * 2**20, 1024, 1
    if "v5" in kind or "v4" in kind:
        # ~0.82 TB/s HBM: bf16 + tm>=512 keeps the MXU fed.
        return 96 * 2**20, 120 * 2**20, 512, 1
    # Unknown chip: conservative (v7x-safe) plan.
    return 44 * 2**20, 56 * 2**20, 512, 1


def plan_llama_mlp(M, hidden, inter, act_dtype, w_dtype, *, tm=None, ti=None):
    """Chip-aware tile plan.  Returns (tm, ti, vmem_limit_bytes)."""
    act_bytes = jnp.dtype(act_dtype).itemsize
    w_bytes = jnp.dtype(w_dtype).itemsize
    budget, cap, tm_target, num_tc = _chip_plan()
    # dtype-aware row granularity: 8 for f32, 16 for bf16, 32 for int8/fp8.
    granule = max(8, 32 // act_bytes)

    tm_fixed, ti_fixed = tm is not None, ti is not None

    if not tm_fixed:
        tm = _pick_tile(M, tm_target, granule)
        # Guarantee the "parallel" m axis spans all TensorCores (v7x: 2 TCs).
        if num_tc > 1 and (M // tm) < num_tc and M >= num_tc * granule:
            tm = _pick_tile(M, max(M // num_tc, granule), granule)

    def pick_ti(cur_tm):
        t = _pick_tile(inter, 512, 128)
        while t > 128 and _vmem_bytes(cur_tm, t, hidden, act_bytes, w_bytes) > budget:
            nt = _pick_tile(inter, max(t // 2, 128), 128)
            if nt >= t:
                break
            t = nt
        return t

    if not ti_fixed:
        ti = pick_ti(tm)

    # Fallback: if ti-shrinking alone cannot meet the budget (very large
    # hidden), shrink tm too — the accumulator / x / out tiles scale with H.
    if not tm_fixed:
        while (_vmem_bytes(tm, ti, hidden, act_bytes, w_bytes) > budget
               and tm > granule):
            new_tm = _pick_tile(M, max(tm // 2, granule), granule)
            if new_tm >= tm:
                break
            tm = new_tm
            if not ti_fixed:
                ti = pick_ti(tm)

    need = _vmem_bytes(tm, ti, hidden, act_bytes, w_bytes)
    vmem_limit = int(min(cap, max(32 * 2**20, int(need * 1.15) + (2 << 20))))
    return tm, ti, vmem_limit


# --------------------------------------------------------------------------- #
# One-time weight relayout (do this at weight-load time in production)
# --------------------------------------------------------------------------- #
def pack_llama_mlp_weights(w_gate, w_up, w_down, ti):
    """Pure parameter relayout:
         w_gu: (I//ti, 2*ti, H)  contiguous [gate_tile ; up_tile] blocks
         w_dn: (I//ti, ti, H)    contiguous down-proj tiles, (K, N) orientation
    """
    inter, hidden = w_gate.shape
    assert inter % ti == 0, (inter, ti)
    n_i = inter // ti
    w_gu = jnp.concatenate(
        [w_gate.reshape(n_i, ti, hidden), w_up.reshape(n_i, ti, hidden)], axis=1)
    w_dn = jnp.transpose(w_down).reshape(n_i, ti, hidden)
    return w_gu, w_dn


# --------------------------------------------------------------------------- #
# Wrapper
# --------------------------------------------------------------------------- #
def llama_mlp(x, w_gate=None, w_up=None, w_down=None, *, tm=None, ti=None,
              packed=None, weight_buffers=None):
    """x: (batch, seq, hidden).

    Preferred (production) path: pass `packed=(w_gu, w_dn)` from
    pack_llama_mlp_weights so no relayout happens at call time.  Raw PyTorch
    nn.Linear (out, in) weights are also accepted and packed on the fly.
    `weight_buffers=3` optionally deepens the weight pipeline (v6e only).
    """
    batch, seq, hidden = x.shape
    M = batch * seq
    x2d = x.reshape(M, hidden)
    act_bytes = jnp.dtype(x.dtype).itemsize

    if packed is not None:
        w_gu, w_dn = packed
        n_i, two_ti, h_ = w_gu.shape
        assert h_ == hidden and two_ti % 2 == 0
        ti = two_ti // 2
        inter = n_i * ti
        assert w_dn.shape == (n_i, ti, hidden)
        tm, ti, vmem_limit = plan_llama_mlp(M, hidden, inter, x.dtype,
                                            w_gu.dtype, tm=tm, ti=ti)
    else:
        inter = w_gate.shape[0]
        assert w_gate.shape == (inter, hidden)
        assert w_up.shape == (inter, hidden)
        assert w_down.shape == (hidden, inter)
        tm, ti, vmem_limit = plan_llama_mlp(M, hidden, inter, x.dtype,
                                            w_gate.dtype, tm=tm, ti=ti)
        # One-time relayout; in production call pack_llama_mlp_weights once at
        # weight-load time and pass packed=... instead.
        w_gu, w_dn = pack_llama_mlp_weights(w_gate, w_up, w_down, ti)
        n_i = inter // ti

    assert M % tm == 0, (M, tm)
    assert inter % ti == 0, (inter, ti)
    w_bytes = jnp.dtype(w_gu.dtype).itemsize

    wspec_kwargs = {}
    if weight_buffers is not None and weight_buffers != 2:
        wspec_kwargs = dict(pipeline_mode=pl.Buffered(weight_buffers))
        extra = (weight_buffers - 2) * (3 * ti) * hidden * w_bytes
        vmem_limit = int(min(_chip_plan()[1], vmem_limit + max(extra, 0)))

    grid = (M // tm, n_i)

    # Weights are re-streamed once per m tile; x/out move once.
    cost = pl.CostEstimate(
        flops=6 * M * inter * hidden,
        transcendentals=M * inter,
        bytes_accessed=(x2d.size * act_bytes
                        + (w_gu.size + w_dn.size) * w_bytes * (M // tm)
                        + M * hidden * act_bytes),
    )

    out2d = pl.pallas_call(
        functools.partial(_llama_mlp_kernel, ti=ti),
        out_shape=jax.ShapeDtypeStruct((M, hidden), x.dtype),
        grid_spec=pltpu.PrefetchScalarGridSpec(
            num_scalar_prefetch=0,
            grid=grid,
            in_specs=[
                pl.BlockSpec((tm, hidden), lambda m, i: (m, 0)),     # x tile
                pl.BlockSpec((None, 2 * ti, hidden),
                             lambda m, i: (i, 0, 0), **wspec_kwargs),  # [gate;up]
                pl.BlockSpec((None, ti, hidden),
                             lambda m, i: (i, 0, 0), **wspec_kwargs),  # down tile
            ],
            out_specs=pl.BlockSpec((tm, hidden), lambda m, i: (m, 0)),
            scratch_shapes=[pltpu.VMEM((tm, hidden), jnp.float32)],
        ),
        compiler_params=pltpu.CompilerParams(
            dimension_semantics=("parallel", "arbitrary"),
            vmem_limit_bytes=vmem_limit,
        ),
        cost_estimate=cost,
    )(x2d, w_gu, w_dn)

    return out2d.reshape(batch, seq, hidden)


# --------------------------------------------------------------------------- #
# Pure-JAX reference
# --------------------------------------------------------------------------- #
def llama_mlp_ref(x, w_gate, w_up, w_down):
    g = jnp.einsum("bsh,ih->bsi", x, w_gate, precision=lax.Precision.HIGHEST)
    u = jnp.einsum("bsh,ih->bsi", x, w_up, precision=lax.Precision.HIGHEST)
    h = jax.nn.silu(g) * u
    return jnp.einsum("bsi,hi->bsh", h, w_down, precision=lax.Precision.HIGHEST)


if __name__ == "__main__":
    # Small, module-consistent shapes (lane-aligned hidden/intermediate).
    batch, seq = 2, 8
    hidden_size = 128
    intermediate_size = 256

    key = jax.random.PRNGKey(0)
    kx, kg, ku, kd = jax.random.split(key, 4)

    x = jax.random.normal(kx, (batch, seq, hidden_size), jnp.float32)
    # PyTorch nn.Linear (out, in) layouts.
    w_gate = jax.random.normal(kg, (intermediate_size, hidden_size), jnp.float32) * 0.05
    w_up = jax.random.normal(ku, (intermediate_size, hidden_size), jnp.float32) * 0.05
    w_down = jax.random.normal(kd, (hidden_size, intermediate_size), jnp.float32) * 0.05

    # f32 correctness check vs a pure-JAX reference (raw-weight convenience path).
    out = jax.block_until_ready(llama_mlp(x, w_gate, w_up, w_down))
    ref = llama_mlp_ref(x, w_gate, w_up, w_down)
    assert out.shape == (batch, seq, hidden_size)
    assert jnp.allclose(out, ref, atol=2e-3, rtol=2e-3), (
        "f32 mismatch, max abs err = %f" % float(jnp.max(jnp.abs(out - ref))))

    # bf16 deployment path with precomputed packed weights (production path):
    # plan once, pack once at weight-load time, call many times.
    M = batch * seq
    _, ti_bf16, _ = plan_llama_mlp(M, hidden_size, intermediate_size,
                                   jnp.bfloat16, jnp.bfloat16)
    packed_bf16 = pack_llama_mlp_weights(w_gate.astype(jnp.bfloat16),
                                         w_up.astype(jnp.bfloat16),
                                         w_down.astype(jnp.bfloat16), ti_bf16)
    out_bf16 = jax.block_until_ready(
        llama_mlp(x.astype(jnp.bfloat16), packed=packed_bf16))
    assert jnp.allclose(out_bf16.astype(jnp.float32), ref, atol=5e-2, rtol=5e-2), \
        "bf16 mismatch vs f32 reference"

    print("KERNEL_OK")
</pallas_src>

<mosaic_0001>
module attributes {stable_mosaic.version = 11 : i64} {
  func.func @_llama_mlp_kernel(%arg0: i32, %arg1: i32, %arg2: memref<16x128xf32, #tpu.memory_space<vmem>>, %arg3: memref<1x512x128xf32, #tpu.memory_space<vmem>>, %arg4: memref<1x256x128xf32, #tpu.memory_space<vmem>>, %arg5: memref<16x128xf32, #tpu.memory_space<vmem>>, %arg6: memref<16x128xf32, #tpu.memory_space<vmem>>) attributes {dimension_semantics = [#tpu.dimension_semantics<parallel>, #tpu.dimension_semantics<arbitrary>], iteration_bounds = array<i64: 1, 1>, scalar_prefetch = 0 : i64, scratch_operands = 1 : i64, tpu.core_type = #tpu.core_type<tc>, window_params = [{transform_indices = @transform_0, window_bounds = array<i64: 16, 128>}, {transform_indices = @transform_1, window_bounds = array<i64: 1, 512, 128>}, {transform_indices = @transform_2, window_bounds = array<i64: 1, 256, 128>}, {transform_indices = @transform_3, window_bounds = array<i64: 16, 128>}]} {
    %c0_i32 = arith.constant 0 : i32
    %0 = arith.cmpi eq, %arg1, %c0_i32 : i32
    %1 = arith.extui %0 : i1 to i32
    %c0_i32_0 = arith.constant 0 : i32
    %2 = arith.cmpi ne, %1, %c0_i32_0 : i32
    scf.if %2 {
      %cst_16 = arith.constant 0.000000e+00 : f32
      %25 = vector.broadcast %cst_16 : f32 to vector<16x128xf32>
      %c0_17 = arith.constant 0 : index
      %c0_18 = arith.constant 0 : index
      %26 = vector.load %arg6[%c0_17, %c0_18] : memref<16x128xf32, #tpu.memory_space<vmem>>, vector<16x128xf32>
      tpu.vector_store %arg6[%c0_17, %c0_18], %25 {strides = array<i32>} : memref<16x128xf32, #tpu.memory_space<vmem>>, vector<16x128xf32>,
    } else {
    }
    %c0 = arith.constant 0 : index
    %c0_1 = arith.constant 0 : index
    %3 = vector.load %arg2[%c0, %c0_1] : memref<16x128xf32, #tpu.memory_space<vmem>>, vector<16x128xf32>
    %c0_2 = arith.constant 0 : index
    %c0_3 = arith.constant 0 : index
    %c0_4 = arith.constant 0 : index
    %4 = vector.load %arg3[%c0_2, %c0_3, %c0_4] : memref<1x512x128xf32, #tpu.memory_space<vmem>>, vector<1x512x128xf32>
    %5 = vector.shape_cast %4 : vector<1x512x128xf32> to vector<512x128xf32>
    %cst = arith.constant dense<0.000000e+00> : vector<16x512xf32>
    %6 = tpu.matmul %3, %5, %cst {dimension_numbers = #tpu.dot_dimension_numbers<[1], [1], [0], [0], [0, 0, 1, 0], [], []>} : vector<16x128xf32>, vector<512x128xf32>, vector<16x512xf32> -> vector<16x512xf32>
    %7 = vector.extract_strided_slice %6 {offsets = [0, 0], sizes = [16, 256], strides = [1, 1]} : vector<16x512xf32> to vector<16x256xf32>
    %8 = vector.extract_strided_slice %6 {offsets = [0, 256], sizes = [16, 256], strides = [1, 1]} : vector<16x512xf32> to vector<16x256xf32>
    %9 = arith.negf %7 : vector<16x256xf32>
    %10 = math.exp %9 : vector<16x256xf32>
    %cst_5 = arith.constant 1.000000e+00 : f32
    %11 = vector.broadcast %cst_5 : f32 to vector<16x256xf32>
    %12 = arith.addf %11, %10 : vector<16x256xf32>
    %13 = arith.divf %11, %12 : vector<16x256xf32>
    %14 = arith.mulf %7, %13 : vector<16x256xf32>
    %15 = arith.mulf %14, %8 : vector<16x256xf32>
    %c0_6 = arith.constant 0 : index
    %c0_7 = arith.constant 0 : index
    %16 = vector.load %arg6[%c0_6, %c0_7] : memref<16x128xf32, #tpu.memory_space<vmem>>, vector<16x128xf32>
    %c0_8 = arith.constant 0 : index
    %c0_9 = arith.constant 0 : index
    %c0_10 = arith.constant 0 : index
    %17 = vector.load %arg4[%c0_8, %c0_9, %c0_10] : memref<1x256x128xf32, #tpu.memory_space<vmem>>, vector<1x256x128xf32>
    %18 = vector.shape_cast %17 : vector<1x256x128xf32> to vector<256x128xf32>
    %cst_11 = arith.constant dense<0.000000e+00> : vector<16x128xf32>
    %19 = tpu.matmul %15, %18, %cst_11 {dimension_numbers = #tpu.dot_dimension_numbers<[1], [0], [0], [1], [0, 0, 1, 1], [], []>} : vector<16x256xf32>, vector<256x128xf32>, vector<16x128xf32> -> vector<16x128xf32>
    %20 = arith.addf %16, %19 : vector<16x128xf32>
    %c0_12 = arith.constant 0 : index
    %c0_13 = arith.constant 0 : index
    %21 = vector.load %arg6[%c0_12, %c0_13] : memref<16x128xf32, #tpu.memory_space<vmem>>, vector<16x128xf32>
    tpu.vector_store %arg6[%c0_12, %c0_13], %20 {strides = array<i32>} : memref<16x128xf32, #tpu.memory_space<vmem>>, vector<16x128xf32>,
    %c0_i32_14 = arith.constant 0 : i32
    %22 = arith.cmpi eq, %arg1, %c0_i32_14 : i32
    %23 = arith.extui %22 : i1 to i32
    %c0_i32_15 = arith.constant 0 : i32
    %24 = arith.cmpi ne, %23, %c0_i32_15 : i32
    scf.if %24 {
      %c0_16 = arith.constant 0 : index
      %c0_17 = arith.constant 0 : index
      %25 = vector.load %arg6[%c0_16, %c0_17] : memref<16x128xf32, #tpu.memory_space<vmem>>, vector<16x128xf32>
      %c0_18 = arith.constant 0 : index
      %c0_19 = arith.constant 0 : index
      %26 = vector.load %arg5[%c0_18, %c0_19] : memref<16x128xf32, #tpu.memory_space<vmem>>, vector<16x128xf32>
      tpu.vector_store %arg5[%c0_18, %c0_19], %25 {strides = array<i32>} : memref<16x128xf32, #tpu.memory_space<vmem>>, vector<16x128xf32>,
    } else {
    }
    return
  }
  func.func @transform_0(%arg0: i32, %arg1: i32) -> (i32, i32) {
    %c0_i32 = arith.constant 0 : i32
    %c0_i32_0 = arith.constant 0 : i32
    return %arg0, %c0_i32 : i32, i32
  }
  func.func @transform_1(%arg0: i32, %arg1: i32) -> (i32, i32, i32) {
    %c0_i32 = arith.constant 0 : i32
    %c0_i32_0 = arith.constant 0 : i32
    %c0_i32_1 = arith.constant 0 : i32
    return %arg1, %c0_i32, %c0_i32_0 : i32, i32, i32
  }
  func.func @transform_2(%arg0: i32, %arg1: i32) -> (i32, i32, i32) {
    %c0_i32 = arith.constant 0 : i32
    %c0_i32_0 = arith.constant 0 : i32
    %c0_i32_1 = arith.constant 0 : i32
    return %arg1, %c0_i32, %c0_i32_0 : i32, i32, i32
  }
  func.func @transform_3(%arg0: i32, %arg1: i32) -> (i32, i32) {
    %c0_i32 = arith.constant 0 : i32
    %c0_i32_0 = arith.constant 0 : i32
    return %arg0, %c0_i32 : i32, i32
  }
}

</mosaic_0001>

<llo_original>
// kernel: tpu_custom_call.1
$region0: #{tpu_custom_call.1}
  #allocation0 [shape = 'u32[]', space=smem, size = 0x4, offset = 0x4, fixed_abs, tag = 'smem constant byte address 0x4 - core index']
  #allocation1 [shape = 'u32[144,128]{1,0:T(1,128)}', space=vmem, size = 0x12000, scoped, tag = 'internal scratch']
  #allocation2 [shape = 'f32[16,128]{1,0:T(8,128)}', space=vmem, size = 0x2000, scoped, tag = 'scratch operand']
  %s0 = inlined_call_operand.hbm [shape: f32[16,128], index: 0, kind: input, shape index: {}]
  %s1 = inlined_call_operand.hbm [shape: f32[1,512,128], index: 1, kind: input, shape index: {}]
  %s2 = inlined_call_operand.hbm [shape: f32[1,256,128], index: 2, kind: input, shape index: {}]
  %s3 = inlined_call_operand.hbm [shape: f32[16,128], index: 3, kind: output, shape index: {}]
  %s4 = sld [smem:[#allocation0]]
  $region42: #{tpu_custom_call.1} parent=0
    _
  %s6 = ssub.s32 1, %s4
  %s7 = scalar_select 0, %s6, %s4
  $region1: #{tpu_custom_call.1} parent=0
    #allocation3 [shape = 'u8[8192]{0}', space=vmem, size = 0x2000, scoped, tag = 'input window, operand 0, single buffered']
    #allocation4 [shape = 's32[1]{0}', space=sflag, size = 0x4, scoped, tag = 'scoped memory for tpu_custom_call.1']
    #allocation5 [shape = 's32[1]{0}', space=sflag, size = 0x4, scoped, tag = 'scoped memory for tpu_custom_call.1']
    #allocation6 [shape = 'u8[262144]{0}', space=vmem, size = 0x40000, scoped, tag = 'input window, operand 1, single buffered']
    #allocation7 [shape = 's32[1]{0}', space=sflag, size = 0x4, scoped, tag = 'scoped memory for tpu_custom_call.1']
    #allocation8 [shape = 'u8[131072]{0}', space=vmem, size = 0x20000, scoped, tag = 'input window, operand 2, single buffered']
    #allocation9 [shape = 'u8[8192]{0}', space=vmem, size = 0x2000, scoped, tag = 'output window, operand 0, single buffered']
    %8 = vsyncpa [#allocation4], 0
    %9 = vsyncpa [#allocation7], 0
    %10 = vsyncpa [#allocation5], 0
    // Predicated region
    $region2: #{tpu_custom_call.1} parent=1 // pred_check
      _
    $region3: #{tpu_custom_call.1} parent=1 // pred_check_branch
      %12 = sbr.rel (0) target = $region5
    $region4: #{tpu_custom_call.1} parent=1 // pred_region
      %s14 = ssub.s32 256, 256
      %15 = vsyncadd [#allocation4], %s14
      %s16 = sshll.u32 [#allocation3], 4
      %s17 = int_to_ptr.vmem [resolvable:$true] %s16
      %22 = dma.hbm_to_vmem [thread:$0]  %s0, 256, %s17, [#allocation4], 128, 128, 8
    $region5: #{tpu_custom_call.1} parent=1 // pred_fallthru
      _
    // Predicated region
    $region6: #{tpu_custom_call.1} parent=1 // pred_check
      _
    $region7: #{tpu_custom_call.1} parent=1 // pred_check_branch
      %24 = sbr.rel (0) target = $region9
    $region8: #{tpu_custom_call.1} parent=1 // pred_region
      %s26 = ssub.s32 8192, 8192
      %27 = vsyncadd [#allocation7], %s26
      %s28 = sshll.u32 [#allocation6], 4
      %s29 = int_to_ptr.vmem [resolvable:$true] %s28
      %34 = dma.hbm_to_vmem [thread:$0]  %s1, 8192, %s29, [#allocation7], 128, 128, 8
    $region9: #{tpu_custom_call.1} parent=1 // pred_fallthru
      _
    // Predicated region
    $region10: #{tpu_custom_call.1} parent=1 // pred_check
      _
    $region11: #{tpu_custom_call.1} parent=1 // pred_check_branch
      %36 = sbr.rel (0) target = $region13
    $region12: #{tpu_custom_call.1} parent=1 // pred_region
      %s38 = ssub.s32 4096, 4096
      %39 = vsyncadd [#allocation7], %s38
      %s40 = sshll.u32 [#allocation8], 4
      %s41 = int_to_ptr.vmem [resolvable:$true] %s40
      %46 = dma.hbm_to_vmem [thread:$0]  %s2, 4096, %s41, [#allocation7], 128, 128, 8
    $region13: #{tpu_custom_call.1} parent=1 // pred_fallthru
      _
    // Predicated region
    $region14: #{tpu_custom_call.1} parent=1 // pred_check
      _
    $region15: #{tpu_custom_call.1} parent=1 // pred_check_branch
      %48 = sbr.rel (0) target = $region17
    $region16: #{tpu_custom_call.1} parent=1 // pred_region
      %49 = dma.done [#allocation4], 256
    $region17: #{tpu_custom_call.1} parent=1 // pred_fallthru
      _
    // Predicated region
    $region18: #{tpu_custom_call.1} parent=1 // pred_check
      _
    $region19: #{tpu_custom_call.1} parent=1 // pred_check_branch
      %51 = sbr.rel (0) target = $region21
    $region20: #{tpu_custom_call.1} parent=1 // pred_region
      %52 = dma.done [#allocation7], 8192
    $region21: #{tpu_custom_call.1} parent=1 // pred_fallthru
      _
    // Predicated region
    $region22: #{tpu_custom_call.1} parent=1 // pred_check
      _
    $region23: #{tpu_custom_call.1} parent=1 // pred_check_branch
      %54 = sbr.rel (0) target = $region25
    $region24: #{tpu_custom_call.1} parent=1 // pred_region
      %55 = dma.done [#allocation7], 4096
    $region25: #{tpu_custom_call.1} parent=1 // pred_fallthru
      _
    %p56 = scmp.eq.s32.totalorder 0, 0
    // Predicated region
    $region26: #{tpu_custom_call.1} parent=1 // pred_check
      %p57 = pneg %p56
    $region27: #{tpu_custom_call.1} parent=1 // pred_check_branch
      %59 = sbr.rel (%p57) target = $region29
    $region28: #{tpu_custom_call.1} parent=1 // pred_region
      %60 = vst [vmem:[#allocation2] sm:$0xff] 0.0
      %61 = vst [vmem:[#allocation2 + $0x8] sm:$0xff] 0.0
    $region29: #{tpu_custom_call.1} parent=1 // pred_fallthru
      _
    %v62 = vld [vmem:[#allocation3] sm:$0xff]
    %v63 = vld [vmem:[#allocation3 + $0x8] sm:$0xff]
    %v64 = vld [vmem:[#allocation6] sm:$0xff]
    %v65 = vld [vmem:[#allocation6 + $0x8] sm:$0xff]
    %v66 = vld [vmem:[#allocation6 + $0x10] sm:$0xff]
    %v67 = vld [vmem:[#allocation6 + $0x18] sm:$0xff]
    %v68 = vld [vmem:[#allocation6 + $0x20] sm:$0xff]
    %v69 = vld [vmem:[#allocation6 + $0x28] sm:$0xff]
    %v70 = vld [vmem:[#allocation6 + $0x30] sm:$0xff]
    %v71 = vld [vmem:[#allocation6 + $0x38] sm:$0xff]
    %v72 = vld [vmem:[#allocation6 + $0x40] sm:$0xff]
    %v73 = vld [vmem:[#allocation6 + $0x48] sm:$0xff]
    %v74 = vld [vmem:[#allocation6 + $0x50] sm:$0xff]
    %v75 = vld [vmem:[#allocation6 + $0x58] sm:$0xff]
    %v76 = vld [vmem:[#allocation6 + $0x60] sm:$0xff]
    %v77 = vld [vmem:[#allocation6 + $0x68] sm:$0xff]
    %v78 = vld [vmem:[#allocation6 + $0x70] sm:$0xff]
    %v79 = vld [vmem:[#allocation6 + $0x78] sm:$0xff]
    %v80 = vld [vmem:[#allocation6 + $0x80] sm:$0xff]
    %v81 = vld [vmem:[#allocation6 + $0x88] sm:$0xff]
    %v82 = vld [vmem:[#allocation6 + $0x90] sm:$0xff]
    %v83 = vld [vmem:[#allocation6 + $0x98] sm:$0xff]
    %v84 = vld [vmem:[#allocation6 + $0xa0] sm:$0xff]
    %v85 = vld [vmem:[#allocation6 + $0xa8] sm:$0xff]
    %v86 = vld [vmem:[#allocation6 + $0xb0] sm:$0xff]
    %v87 = vld [vmem:[#allocation6 + $0xb8] sm:$0xff]
    %v88 = vld [vmem:[#allocation6 + $0xc0] sm:$0xff]
    %v89 = vld [vmem:[#allocation6 + $0xc8] sm:$0xff]
    %v90 = vld [vmem:[#allocation6 + $0xd0] sm:$0xff]
    %v91 = vld [vmem:[#allocation6 + $0xd8] sm:$0xff]
    %v92 = vld [vmem:[#allocation6 + $0xe0] sm:$0xff]
    %v93 = vld [vmem:[#allocation6 + $0xe8] sm:$0xff]
    %v94 = vld [vmem:[#allocation6 + $0xf0] sm:$0xff]
    %v95 = vld [vmem:[#allocation6 + $0xf8] sm:$0xff]
    %v96 = vld [vmem:[#allocation6 + $0x100] sm:$0xff]
    %v97 = vld [vmem:[#allocation6 + $0x108] sm:$0xff]
    %v98 = vld [vmem:[#allocation6 + $0x110] sm:$0xff]
    %v99 = vld [vmem:[#allocation6 + $0x118] sm:$0xff]
    %v100 = vld [vmem:[#allocation6 + $0x120] sm:$0xff]
    %v101 = vld [vmem:[#allocation6 + $0x128] sm:$0xff]
    %v102 = vld [vmem:[#allocation6 + $0x130] sm:$0xff]
    %v103 = vld [vmem:[#allocation6 + $0x138] sm:$0xff]
    %v104 = vld [vmem:[#allocation6 + $0x140] sm:$0xff]
    %v105 = vld [vmem:[#allocation6 + $0x148] sm:$0xff]
    %v106 = vld [vmem:[#allocation6 + $0x150] sm:$0xff]
    %v107 = vld [vmem:[#allocation6 + $0x158] sm:$0xff]
    %v108 = vld [vmem:[#allocation6 + $0x160] sm:$0xff]
    %v109 = vld [vmem:[#allocation6 + $0x168] sm:$0xff]
    %v110 = vld [vmem:[#allocation6 + $0x170] sm:$0xff]
    %v111 = vld [vmem:[#allocation6 + $0x178] sm:$0xff]
    %v112 = vld [vmem:[#allocation6 + $0x180] sm:$0xff]
    %v113 = vld [vmem:[#allocation6 + $0x188] sm:$0xff]
    %v114 = vld [vmem:[#allocation6 + $0x190] sm:$0xff]
    %v115 = vld [vmem:[#allocation6 + $0x198] sm:$0xff]
    %v116 = vld [vmem:[#allocation6 + $0x1a0] sm:$0xff]
    %v117 = vld [vmem:[#allocation6 + $0x1a8] sm:$0xff]
    %v118 = vld [vmem:[#allocation6 + $0x1b0] sm:$0xff]
    %v119 = vld [vmem:[#allocation6 + $0x1b8] sm:$0xff]
    %v120 = vld [vmem:[#allocation6 + $0x1c0] sm:$0xff]
    %v121 = vld [vmem:[#allocation6 + $0x1c8] sm:$0xff]
    %v122 = vld [vmem:[#allocation6 + $0x1d0] sm:$0xff]
    %v123 = vld [vmem:[#allocation6 + $0x1d8] sm:$0xff]
    %v124 = vld [vmem:[#allocation6 + $0x1e0] sm:$0xff]
    %v125 = vld [vmem:[#allocation6 + $0x1e8] sm:$0xff]
    %v126 = vld [vmem:[#allocation6 + $0x1f0] sm:$0xff]
    %v127 = vld [vmem:[#allocation6 + $0x1f8] sm:$0xff]
    %128 = vmatprep.subr.mxu0 0.0
    %129 = vmatpush1.xpose.msra.mxu0 %v79
    %130 = vmatprep.subr.mxu0 0.0
    %131 = vmatpush1.xpose.msra.mxu0 %v78
    %132 = vmatprep.subr.mxu0 0.0
    %133 = vmatpush1.xpose.msra.mxu0 %v77
    %134 = vmatprep.subr.mxu0 0.0
    %135 = vmatpush1.xpose.msra.mxu0 %v76
    %136 = vmatprep.subr.mxu0 0.0
    %137 = vmatpush1.xpose.msra.mxu0 %v75
    %138 = vmatprep.subr.mxu0 0.0
    %139 = vmatpush1.xpose.msra.mxu0 %v74
    %140 = vmatprep.subr.mxu0 0.0
    %141 = vmatpush1.xpose.msra.mxu0 %v73
    %142 = vmatprep.subr.mxu0 0.0
    %143 = vmatpush1.xpose.msra.mxu0 %v72
    %144 = vmatprep.subr.mxu0 0.0
    %145 = vmatpush1.xpose.msra.mxu0 %v71
    %146 = vmatprep.subr.mxu0 0.0
    %147 = vmatpush1.xpose.msra.mxu0 %v70
    %148 = vmatprep.subr.mxu0 0.0
    %149 = vmatpush1.xpose.msra.mxu0 %v69
    %150 = vmatprep.subr.mxu0 0.0
    %151 = vmatpush1.xpose.msra.mxu0 %v68
    %152 = vmatprep.subr.mxu0 0.0
    %153 = vmatpush1.xpose.msra.mxu0 %v67
    %154 = vmatprep.subr.mxu0 0.0
    %155 = vmatpush1.xpose.msra.mxu0 %v66
    %156 = vmatprep.subr.mxu0 0.0
    %157 = vmatpush1.xpose.msra.mxu0 %v65
    %158 = vmatprep.subr.mxu0 0.0
    %159 = vmatpush1.xpose.msra.mxu0 %v64
    %160 = vmatprep.subr.mxu0 0.0
    %161 = vmatpush2.xpose.msra.mxu0 %v95
    %162 = vmatprep.subr.mxu0 0.0
    %163 = vmatpush2.xpose.msra.mxu0 %v94
    %164 = vmatprep.subr.mxu0 0.0
    %165 = vmatpush2.xpose.msra.mxu0 %v93
    %166 = vmatprep.subr.mxu0 0.0
    %167 = vmatpush2.xpose.msra.mxu0 %v92
    %168 = vmatprep.subr.mxu0 0.0
    %169 = vmatpush2.xpose.msra.mxu0 %v91
    %170 = vmatprep.subr.mxu0 0.0
    %171 = vmatpush2.xpose.msra.mxu0 %v90
    %172 = vmatprep.subr.mxu0 0.0
    %173 = vmatpush2.xpose.msra.mxu0 %v89
    %174 = vmatprep.subr.mxu0 0.0
    %175 = vmatpush2.xpose.msra.mxu0 %v88
    %176 = vmatprep.subr.mxu0 0.0
    %177 = vmatpush2.xpose.msra.mxu0 %v87
    %178 = vmatprep.subr.mxu0 0.0
    %179 = vmatpush2.xpose.msra.mxu0 %v86
    %180 = vmatprep.subr.mxu0 0.0
    %181 = vmatpush2.xpose.msra.mxu0 %v85
    %182 = vmatprep.subr.mxu0 0.0
    %183 = vmatpush2.xpose.msra.mxu0 %v84
    %184 = vmatprep.subr.mxu0 0.0
    %185 = vmatpush2.xpose.msra.mxu0 %v83
    %186 = vmatprep.subr.mxu0 0.0
    %187 = vmatpush2.xpose.msra.mxu0 %v82
    %188 = vmatprep.subr.mxu0 0.0
    %189 = vmatpush2.xpose.msra.mxu0 %v81
    %190 = vmatprep.subr.mxu0 0.0
    %191 = vmatpush2.xpose.msra.mxu0 %v80
    %192 = vmatprep.mubr.f32.mxu0 0.0
    %193 = vmatmul.mubr.f32.gmra.mxu0 %v62
    %v194 = vpop.f32.mrf.mxu0
    %v195 = vadd.f32 0.0, %v194
    %v196 = vpop.f32.mrf.mxu0
    %v197 = vadd.f32 0.0, %v196
    %198 = vmatprep.mubr.f32.mxu0 0.0
    %199 = vmatmul.mubr.f32.gmra.mxu0 %v63
    %v200 = vpop.f32.mrf.mxu0
    %v201 = vadd.f32 0.0, %v200
    %v202 = vpop.f32.mrf.mxu0
    %v203 = vadd.f32 0.0, %v202
    %204 = vdwg.mxu0
    %205 = vmatprep.subr.mxu0 0.0
    %206 = vmatpush1.xpose.msra.mxu0 %v111
    %207 = vmatprep.subr.mxu0 0.0
    %208 = vmatpush1.xpose.msra.mxu0 %v110
    %209 = vmatprep.subr.mxu0 0.0
    %210 = vmatpush1.xpose.msra.mxu0 %v109
    %211 = vmatprep.subr.mxu0 0.0
    %212 = vmatpush1.xpose.msra.mxu0 %v108
    %213 = vmatprep.subr.mxu0 0.0
    %214 = vmatpush1.xpose.msra.mxu0 %v107
    %215 = vmatprep.subr.mxu0 0.0
    %216 = vmatpush1.xpose.msra.mxu0 %v106
    %217 = vmatprep.subr.mxu0 0.0
    %218 = vmatpush1.xpose.msra.mxu0 %v105
    %219 = vmatprep.subr.mxu0 0.0
    %220 = vmatpush1.xpose.msra.mxu0 %v104
    %221 = vmatprep.subr.mxu0 0.0
    %222 = vmatpush1.xpose.msra.mxu0 %v103
    %223 = vmatprep.subr.mxu0 0.0
    %224 = vmatpush1.xpose.msra.mxu0 %v102
    %225 = vmatprep.subr.mxu0 0.0
    %226 = vmatpush1.xpose.msra.mxu0 %v101
    %227 = vmatprep.subr.mxu0 0.0
    %228 = vmatpush1.xpose.msra.mxu0 %v100
    %229 = vmatprep.subr.mxu0 0.0
    %230 = vmatpush1.xpose.msra.mxu0 %v99
    %231 = vmatprep.subr.mxu0 0.0
    %232 = vmatpush1.xpose.msra.mxu0 %v98
    %233 = vmatprep.subr.mxu0 0.0
    %234 = vmatpush1.xpose.msra.mxu0 %v97
    %235 = vmatprep.subr.mxu0 0.0
    %236 = vmatpush1.xpose.msra.mxu0 %v96
    %237 = vmatprep.subr.mxu0 0.0
    %238 = vmatpush2.xpose.msra.mxu0 %v127
    %239 = vmatprep.subr.mxu0 0.0
    %240 = vmatpush2.xpose.msra.mxu0 %v126
    %241 = vmatprep.subr.mxu0 0.0
    %242 = vmatpush2.xpose.msra.mxu0 %v125
    %243 = vmatprep.subr.mxu0 0.0
    %244 = vmatpush2.xpose.msra.mxu0 %v124
    %245 = vmatprep.subr.mxu0 0.0
    %246 = vmatpush2.xpose.msra.mxu0 %v123
    %247 = vmatprep.subr.mxu0 0.0
    %248 = vmatpush2.xpose.msra.mxu0 %v122
    %249 = vmatprep.subr.mxu0 0.0
    %250 = vmatpush2.xpose.msra.mxu0 %v121
    %251 = vmatprep.subr.mxu0 0.0
    %252 = vmatpush2.xpose.msra.mxu0 %v120
    %253 = vmatprep.subr.mxu0 0.0
    %254 = vmatpush2.xpose.msra.mxu0 %v119
    %255 = vmatprep.subr.mxu0 0.0
    %256 = vmatpush2.xpose.msra.mxu0 %v118
    %257 = vmatprep.subr.mxu0 0.0
    %258 = vmatpush2.xpose.msra.mxu0 %v117
    %259 = vmatprep.subr.mxu0 0.0
    %260 = vmatpush2.xpose.msra.mxu0 %v116
    %261 = vmatprep.subr.mxu0 0.0
    %262 = vmatpush2.xpose.msra.mxu0 %v115
    %263 = vmatprep.subr.mxu0 0.0
    %264 = vmatpush2.xpose.msra.mxu0 %v114
    %265 = vmatprep.subr.mxu0 0.0
    %266 = vmatpush2.xpose.msra.mxu0 %v113
    %267 = vmatprep.subr.mxu0 0.0
    %268 = vmatpush2.xpose.msra.mxu0 %v112
    %269 = vmatprep.mubr.f32.mxu0 0.0
    %270 = vmatmul.mubr.f32.gmra.mxu0 %v62
    %v271 = vpop.f32.mrf.mxu0
    %v272 = vadd.f32 0.0, %v271
    %v273 = vpop.f32.mrf.mxu0
    %v274 = vadd.f32 0.0, %v273
    %275 = vmatprep.mubr.f32.mxu0 0.0
    %276 = vmatmul.mubr.f32.gmra.mxu0 %v63
    %v277 = vpop.f32.mrf.mxu0
    %v278 = vadd.f32 0.0, %v277
    %v279 = vpop.f32.mrf.mxu0
    %v280 = vadd.f32 0.0, %v279
    %281 = vdwg.mxu0
    %v282 = vxor.u32 %v195, 2147483648
    %v283 = vxor.u32 %v197, 2147483648
    %v284 = vxor.u32 %v201, 2147483648
    %v285 = vxor.u32 %v203, 2147483648
    %v286 = vmul.f32 %v282, 1.442695
    %v287 = vpow.pop %v286
    %v288 = vmul.f32 %v283, 1.442695
    %v289 = vpow.pop %v288
    %v290 = vmul.f32 %v284, 1.442695
    %v291 = vpow.pop %v290
    %v292 = vmul.f32 %v285, 1.442695
    %v293 = vpow.pop %v292
    %v294 = vadd.f32 %v287, 1.0
    %v295 = vadd.f32 %v289, 1.0
    %v296 = vadd.f32 %v291, 1.0
    %v297 = vadd.f32 %v293, 1.0
    %v298 = vrcp.pop %v294
    %v299 = vmul.f32 1.0, %v298
    %v300 = vrcp.pop %v295
    %v301 = vmul.f32 1.0, %v300
    %v302 = vrcp.pop %v296
    %v303 = vmul.f32 1.0, %v302
    %v304 = vrcp.pop %v297
    %v305 = vmul.f32 1.0, %v304
    %v306 = vmul.f32 %v195, %v299
    %v307 = vmul.f32 %v197, %v301
    %v308 = vmul.f32 %v201, %v303
    %v309 = vmul.f32 %v203, %v305
    %v310 = vmul.f32 %v306, %v272
    %v311 = vmul.f32 %v307, %v274
    %v312 = vmul.f32 %v308, %v278
    %v313 = vmul.f32 %v309, %v280
    %v314 = vld [vmem:[#allocation2] sm:$0xff]
    %v315 = vld [vmem:[#allocation2 + $0x8] sm:$0xff]
    %v316 = vld [vmem:[#allocation8] sm:$0xff]
    %v317 = vld [vmem:[#allocation8 + $0x8] sm:$0xff]
    %v318 = vld [vmem:[#allocation8 + $0x10] sm:$0xff]
    %v319 = vld [vmem:[#allocation8 + $0x18] sm:$0xff]
    %v320 = vld [vmem:[#allocation8 + $0x20] sm:$0xff]
    %v321 = vld [vmem:[#allocation8 + $0x28] sm:$0xff]
    %v322 = vld [vmem:[#allocation8 + $0x30] sm:$0xff]
    %v323 = vld [vmem:[#allocation8 + $0x38] sm:$0xff]
    %v324 = vld [vmem:[#allocation8 + $0x40] sm:$0xff]
    %v325 = vld [vmem:[#allocation8 + $0x48] sm:$0xff]
    %v326 = vld [vmem:[#allocation8 + $0x50] sm:$0xff]
    %v327 = vld [vmem:[#allocation8 + $0x58] sm:$0xff]
    %v328 = vld [vmem:[#allocation8 + $0x60] sm:$0xff]
    %v329 = vld [vmem:[#allocation8 + $0x68] sm:$0xff]
    %v330 = vld [vmem:[#allocation8 + $0x70] sm:$0xff]
    %v331 = vld [vmem:[#allocation8 + $0x78] sm:$0xff]
    %v332 = vld [vmem:[#allocation8 + $0x80] sm:$0xff]
    %v333 = vld [vmem:[#allocation8 + $0x88] sm:$0xff]
    %v334 = vld [vmem:[#allocation8 + $0x90] sm:$0xff]
    %v335 = vld [vmem:[#allocation8 + $0x98] sm:$0xff]
    %v336 = vld [vmem:[#allocation8 + $0xa0] sm:$0xff]
    %v337 = vld [vmem:[#allocation8 + $0xa8] sm:$0xff]
    %v338 = vld [vmem:[#allocation8 + $0xb0] sm:$0xff]
    %v339 = vld [vmem:[#allocation8 + $0xb8] sm:$0xff]
    %v340 = vld [vmem:[#allocation8 + $0xc0] sm:$0xff]
    %v341 = vld [vmem:[#allocation8 + $0xc8] sm:$0xff]
    %v342 = vld [vmem:[#allocation8 + $0xd0] sm:$0xff]
    %v343 = vld [vmem:[#allocation8 + $0xd8] sm:$0xff]
    %v344 = vld [vmem:[#allocation8 + $0xe0] sm:$0xff]
    %v345 = vld [vmem:[#allocation8 + $0xe8] sm:$0xff]
    %v346 = vld [vmem:[#allocation8 + $0xf0] sm:$0xff]
    %v347 = vld [vmem:[#allocation8 + $0xf8] sm:$0xff]
    %348 = vmatprep.subr.mxu0 0.0
    %349 = vmatpush1.msra.mxu0 %v331
    %350 = vmatprep.subr.mxu0 0.0
    %351 = vmatpush1.msra.mxu0 %v330
    %352 = vmatprep.subr.mxu0 0.0
    %353 = vmatpush1.msra.mxu0 %v329
    %354 = vmatprep.subr.mxu0 0.0
    %355 = vmatpush1.msra.mxu0 %v328
    %356 = vmatprep.subr.mxu0 0.0
    %357 = vmatpush1.msra.mxu0 %v327
    %358 = vmatprep.subr.mxu0 0.0
    %359 = vmatpush1.msra.mxu0 %v326
    %360 = vmatprep.subr.mxu0 0.0
    %361 = vmatpush1.msra.mxu0 %v325
    %362 = vmatprep.subr.mxu0 0.0
    %363 = vmatpush1.msra.mxu0 %v324
    %364 = vmatprep.subr.mxu0 0.0
    %365 = vmatpush1.msra.mxu0 %v323
    %366 = vmatprep.subr.mxu0 0.0
    %367 = vmatpush1.msra.mxu0 %v322
    %368 = vmatprep.subr.mxu0 0.0
    %369 = vmatpush1.msra.mxu0 %v321
    %370 = vmatprep.subr.mxu0 0.0
    %371 = vmatpush1.msra.mxu0 %v320
    %372 = vmatprep.subr.mxu0 0.0
    %373 = vmatpush1.msra.mxu0 %v319
    %374 = vmatprep.subr.mxu0 0.0
    %375 = vmatpush1.msra.mxu0 %v318
    %376 = vmatprep.subr.mxu0 0.0
    %377 = vmatpush1.msra.mxu0 %v317
    %378 = vmatprep.subr.mxu0 0.0
    %379 = vmatpush1.msra.mxu0 %v316
    %380 = vmatprep.subr.mxu0 0.0
    %381 = vmatpush2.msra.mxu0 %v347
    %382 = vmatprep.subr.mxu0 0.0
    %383 = vmatpush2.msra.mxu0 %v346
    %384 = vmatprep.subr.mxu0 0.0
    %385 = vmatpush2.msra.mxu0 %v345
    %386 = vmatprep.subr.mxu0 0.0
    %387 = vmatpush2.msra.mxu0 %v344
    %388 = vmatprep.subr.mxu0 0.0
    %389 = vmatpush2.msra.mxu0 %v343
    %390 = vmatprep.subr.mxu0 0.0
    %391 = vmatpush2.msra.mxu0 %v342
    %392 = vmatprep.subr.mxu0 0.0
    %393 = vmatpush2.msra.mxu0 %v341
    %394 = vmatprep.subr.mxu0 0.0
    %395 = vmatpush2.msra.mxu0 %v340
    %396 = vmatprep.subr.mxu0 0.0
    %397 = vmatpush2.msra.mxu0 %v339
    %398 = vmatprep.subr.mxu0 0.0
    %399 = vmatpush2.msra.mxu0 %v338
    %400 = vmatprep.subr.mxu0 0.0
    %401 = vmatpush2.msra.mxu0 %v337
    %402 = vmatprep.subr.mxu0 0.0
    %403 = vmatpush2.msra.mxu0 %v336
    %404 = vmatprep.subr.mxu0 0.0
    %405 = vmatpush2.msra.mxu0 %v335
    %406 = vmatprep.subr.mxu0 0.0
    %407 = vmatpush2.msra.mxu0 %v334
    %408 = vmatprep.subr.mxu0 0.0
    %409 = vmatpush2.msra.mxu0 %v333
    %410 = vmatprep.subr.mxu0 0.0
    %411 = vmatpush2.msra.mxu0 %v332
    %412 = vmatprep.mubr.f32.mxu0 %v311
    %413 = vmatmul.mubr.f32.gmra.mxu0 %v310
    %v414 = vpop.f32.mrf.mxu0
    %v415 = vadd.f32 0.0, %v414
    %v416 = vpop.f32.mrf.mxu0
    %417 = vmatprep.mubr.f32.mxu0 %v313
    %418 = vmatmul.mubr.f32.gmra.mxu0 %v312
    %v419 = vpop.f32.mrf.mxu0
    %v420 = vadd.f32 0.0, %v419
    %v421 = vpop.f32.mrf.mxu0
    %422 = vdwg.mxu0
    %v423 = vadd.f32 %v314, %v415
    %v424 = vadd.f32 %v315, %v420
    %425 = vst [vmem:[#allocation2] sm:$0xff] %v423
    %426 = vst [vmem:[#allocation2 + $0x8] sm:$0xff] %v424
    // Predicated region
    $region30: #{tpu_custom_call.1} parent=1 // pred_check
      %p427 = pneg %p56
    $region31: #{tpu_custom_call.1} parent=1 // pred_check_branch
      %429 = sbr.rel (%p427) target = $region33
    $region32: #{tpu_custom_call.1} parent=1 // pred_region
      %v430 = vld [vmem:[#allocation2] sm:$0xff]
      %v431 = vld [vmem:[#allocation2 + $0x8] sm:$0xff]
      %432 = vst [vmem:[#allocation9] sm:$0xff] %v430
      %433 = vst [vmem:[#allocation9 + $0x8] sm:$0xff] %v431
    $region33: #{tpu_custom_call.1} parent=1 // pred_fallthru
      _
    // Predicated region
    $region34: #{tpu_custom_call.1} parent=1 // pred_check
      _
    $region35: #{tpu_custom_call.1} parent=1 // pred_check_branch
      %435 = sbr.rel (0) target = $region37
    $region36: #{tpu_custom_call.1} parent=1 // pred_region
      %s437 = ssub.s32 256, 256
      %438 = vsyncadd [#allocation5], %s437
      %s439 = sshll.u32 [#allocation9], 4
      %s440 = int_to_ptr.vmem [resolvable:$true] %s439
      %445 = dma.vmem_to_hbm [thread:$0]  %s440, 256, %s3, [#allocation5], 128, 128, 8
    $region37: #{tpu_custom_call.1} parent=1 // pred_fallthru
      _
    // Predicated region
    $region38: #{tpu_custom_call.1} parent=1 // pred_check
      _
    $region39: #{tpu_custom_call.1} parent=1 // pred_check_branch
      %447 = sbr.rel (0) target = $region41
    $region40: #{tpu_custom_call.1} parent=1 // pred_region
      %448 = dma.done [#allocation5], 256
    $region41: #{tpu_custom_call.1} parent=1 // pred_fallthru
      _
    %449 = vsyncpa [#allocation4], 1
    %450 = vsyncpa [#allocation7], 1
    %451 = vsyncpa [#allocation5], 1

</llo_original>
